<compile_context>
chip_gen: v7x
topology: tpu7x:2x2x1
jax: 0.10.0
libtpu: 0.0.40
codegen_flags: <defaults>
</compile_context>

<pallas_src>
import functools

import jax
import jax.numpy as jnp
from jax.experimental import pallas as pl
from jax.experimental.pallas import tpu as pltpu

LANE = 128
_VMEM_LIMIT_BYTES = 32 * 1024 * 1024  # safe on v5e/v6e (128 MiB) and v7x (64 MiB)


def _round_up(x, m):
    return (x + m - 1) // m * m


def _pick_tiling(n):
    """Return (n_pad, tm, tk) with tm, tk | n_pad and (8,128)-friendly tiles."""
    if n <= 256:
        n_pad = _round_up(max(n, 1), LANE)
        return n_pad, n_pad, n_pad
    # 256/512 tiles fill the 256x256 MXU (v6e/v7x) and keep double-buffered
    # bf16 A_hat tiles (~0.5 MiB/buffer) far under v7x's 64 MiB VMEM.
    tm, tk = 256, 512
    return _round_up(n, 512), tm, tk


# ---------------------------------------------------------------------------
# Pallas kernels
# ---------------------------------------------------------------------------
def _xw_kernel(x_ref, w_ref, o_ref):
    # XW row tile: [tm, c_in] @ [c_in, c_out_pad] -> bf16 (f32 accumulation).
    o_ref[...] = jnp.dot(
        x_ref[...], w_ref[...], preferred_element_type=jnp.float32
    ).astype(o_ref.dtype)


def _gcn_agg_kernel(a_ref, xw_ref, b_ref, o_ref, acc_ref, *, activation, valid_cols):
    # out[i] = act( sum_k A_hat[i, k] @ XW[k] + b )
    k = pl.program_id(1)

    @pl.when(k == 0)
    def _():
        acc_ref[...] = jnp.zeros_like(acc_ref)

    acc_ref[...] += jnp.dot(
        a_ref[...], xw_ref[...], preferred_element_type=jnp.float32
    )

    @pl.when(k == pl.num_programs(1) - 1)
    def _():
        h = acc_ref[...] + b_ref[...]  # f32 epilogue (v5e VPU has no bf16)
        if activation == "relu":
            h = jnp.maximum(h, 0.0)
        elif activation == "log_softmax":
            # Mask zero-padded lanes to -inf so the reductions only see the
            # real `valid_cols` feature columns.
            col = jax.lax.broadcasted_iota(jnp.int32, h.shape, 1)
            h = jnp.where(col < valid_cols, h, -jnp.inf)
            m = jnp.max(h, axis=-1, keepdims=True)
            s = h - m
            lse = jnp.log(jnp.sum(jnp.exp(s), axis=-1, keepdims=True))
            h = s - lse
        o_ref[...] = h.astype(o_ref.dtype)


# ---------------------------------------------------------------------------
# One GCNConv layer:  act( A_hat @ (H @ W) + b )
# ---------------------------------------------------------------------------
def gcn_layer(a_hat_pad, h, w, b, activation, *, tm, tk):
    n_pad = a_hat_pad.shape[0]
    c_in, c_out = w.shape
    c_in_pad = h.shape[1]                 # h already lane-padded (or raw c_in)
    c_out_pad = _round_up(c_out, LANE)    # lane-dense output

    w_pad = jnp.zeros((c_in_pad, c_out_pad), jnp.float32).at[:c_in, :c_out].set(w)
    b_pad = jnp.zeros((1, c_out_pad), jnp.float32).at[0, :c_out].set(b)

    # --- Stage 1: XW = H @ W (hoisted out of the A_hat streaming loop) -----
    xw = pl.pallas_call(
        _xw_kernel,
        out_shape=jax.ShapeDtypeStruct((n_pad, c_out_pad), jnp.bfloat16),
        grid=(n_pad // tm,),
        in_specs=[
            pl.BlockSpec((tm, c_in_pad), lambda i: (i, 0)),
            pl.BlockSpec((c_in_pad, c_out_pad), lambda i: (0, 0)),  # resident W
        ],
        out_specs=pl.BlockSpec((tm, c_out_pad), lambda i: (i, 0)),
        compiler_params=pltpu.CompilerParams(
            dimension_semantics=("parallel",),
            vmem_limit_bytes=_VMEM_LIMIT_BYTES,
        ),
    )(h.astype(jnp.bfloat16), w_pad.astype(jnp.bfloat16))

    # --- Stage 2: stream bf16 A_hat tiles against resident XW blocks -------
    kernel = functools.partial(
        _gcn_agg_kernel, activation=activation, valid_cols=c_out
    )
    out = pl.pallas_call(
        kernel,
        out_shape=jax.ShapeDtypeStruct((n_pad, c_out_pad), jnp.float32),
        grid=(n_pad // tm, n_pad // tk),  # reduction axis (k) last
        in_specs=[
            pl.BlockSpec((tm, tk), lambda i, k: (i, k)),           # A_hat (bf16)
            pl.BlockSpec((tk, c_out_pad), lambda i, k: (k, 0)),    # XW (bf16)
            pl.BlockSpec((1, c_out_pad), lambda i, k: (0, 0)),     # bias
        ],
        out_specs=pl.BlockSpec((tm, c_out_pad), lambda i, k: (i, 0)),
        scratch_shapes=[pltpu.VMEM((tm, c_out_pad), jnp.float32)],
        compiler_params=pltpu.CompilerParams(
            dimension_semantics=("parallel", "arbitrary"),
            vmem_limit_bytes=_VMEM_LIMIT_BYTES,
        ),
    )(a_hat_pad, xw, b_pad)
    return out


# ---------------------------------------------------------------------------
# Glue: normalized adjacency (built/padded once), params, forward
# ---------------------------------------------------------------------------
def build_normalized_adjacency(edge_index, num_nodes):
    """A_hat = D^{-1/2} (A + I_remaining) D^{-1/2}, dense f32.

    Mirrors torch_geometric's gcn_norm: edge weights scatter-ADD (multigraph
    safe) and self-loops added only to nodes that lack one.
    """
    src = edge_index[0]
    dst = edge_index[1]
    a = jnp.zeros((num_nodes, num_nodes), jnp.float32)
    a = a.at[dst, src].add(1.0)                       # message src -> dst
    diag = jnp.diagonal(a)
    a = a + jnp.diag(jnp.where(diag > 0, 0.0, 1.0))   # add_remaining_self_loops
    deg = jnp.sum(a, axis=1)
    dinv_sqrt = jnp.where(deg > 0, jax.lax.rsqrt(deg), 0.0)
    return dinv_sqrt[:, None] * a * dinv_sqrt[None, :]


def prepare_adjacency(edge_index, num_nodes, n_pad):
    """Build A_hat once, zero-pad to [n_pad, n_pad], cast to bf16 for the MXU."""
    a = build_normalized_adjacency(edge_index, num_nodes)
    a_pad = jnp.zeros((n_pad, n_pad), jnp.float32).at[:num_nodes, :num_nodes].set(a)
    return a_pad.astype(jnp.bfloat16)


def glorot_uniform(key, fan_in, fan_out):
    limit = jnp.sqrt(6.0 / (fan_in + fan_out))
    return jax.random.uniform(key, (fan_in, fan_out), jnp.float32, -limit, limit)


def init_gcn_params(key, in_channels, hidden_channels, out_channels):
    dims = [in_channels] + list(hidden_channels) + [out_channels]
    params = []
    for i in range(len(dims) - 1):
        key, sub = jax.random.split(key)
        w = glorot_uniform(sub, dims[i], dims[i + 1])
        b = jnp.zeros((dims[i + 1],), jnp.float32)
        params.append((w, b))
    return params


def gcn_forward(x, a_hat_pad, params, *, num_nodes, tm, tk):
    n_pad = a_hat_pad.shape[0]
    out_channels = params[-1][0].shape[1]

    # Zero-pad node rows once; activations stay lane-padded between layers.
    h = jnp.zeros((n_pad, x.shape[1]), jnp.float32).at[:num_nodes].set(x)

    for (w, b) in params[:-1]:
        h = gcn_layer(a_hat_pad, h, w, b, "relu", tm=tm, tk=tk)
    w, b = params[-1]
    h = gcn_layer(a_hat_pad, h, w, b, "log_softmax", tm=tm, tk=tk)

    return h[:num_nodes, :out_channels]


# ---------------------------------------------------------------------------
if __name__ == "__main__":
    key = jax.random.PRNGKey(0)

    num_nodes = 16
    in_channels = 8
    hidden_channels = [32, 16]
    out_channels = 4

    k_x, k_e, k_p = jax.random.split(key, 3)

    # Deterministic node features.
    x = jax.random.normal(k_x, (num_nodes, in_channels), jnp.float32)

    # Deterministic synthetic undirected edge set (ring + a few chords).
    src = jnp.arange(num_nodes, dtype=jnp.int32)
    dst = (src + 1) % num_nodes
    chord_src = jnp.array([0, 3, 5, 7], dtype=jnp.int32)
    chord_dst = jnp.array([8, 11, 13, 2], dtype=jnp.int32)
    srcs = jnp.concatenate([src, dst, chord_src, chord_dst])
    dsts = jnp.concatenate([dst, src, chord_dst, chord_src])
    edge_index = jnp.stack([srcs, dsts], axis=0)  # [2, E]

    params = init_gcn_params(k_p, in_channels, hidden_channels, out_channels)

    # Build + pad + cast A_hat ONCE (cached across layers and forward calls).
    n_pad, tm, tk = _pick_tiling(num_nodes)
    a_hat_pad = prepare_adjacency(edge_index, num_nodes, n_pad)

    out = gcn_forward(x, a_hat_pad, params, num_nodes=num_nodes, tm=tm, tk=tk)
    out = jax.block_until_ready(out)

    # Sanity: log_softmax rows should sum (in prob space) to ~1.
    row_sums = jnp.exp(out).sum(axis=1)
    assert out.shape == (num_nodes, out_channels)
    assert bool(jnp.all(jnp.abs(row_sums - 1.0) < 1e-3))
    assert bool(jnp.all(jnp.isfinite(out)))

    print("KERNEL_OK")
</pallas_src>

<mosaic_0001>
module attributes {stable_mosaic.version = 11 : i64} {
  func.func @_xw_kernel(%arg0: i32, %arg1: memref<128x8xbf16, #tpu.memory_space<vmem>>, %arg2: memref<8x128xbf16, #tpu.memory_space<vmem>>, %arg3: memref<128x128xbf16, #tpu.memory_space<vmem>>) attributes {dimension_semantics = [#tpu.dimension_semantics<parallel>], iteration_bounds = array<i64: 1>, scalar_prefetch = 0 : i64, scratch_operands = 0 : i64, tpu.core_type = #tpu.core_type<tc>, window_params = [{transform_indices = @transform_0, window_bounds = array<i64: 128, 8>}, {pipeline_mode = #tpu.pipeline_mode<synchronous>, transform_indices = @transform_1, window_bounds = array<i64: 8, 128>}, {transform_indices = @transform_2, window_bounds = array<i64: 128, 128>}]} {
    %c0 = arith.constant 0 : index
    %c0_0 = arith.constant 0 : index
    %0 = vector.load %arg1[%c0, %c0_0] : memref<128x8xbf16, #tpu.memory_space<vmem>>, vector<128x8xbf16>
    %c0_1 = arith.constant 0 : index
    %c0_2 = arith.constant 0 : index
    %1 = vector.load %arg2[%c0_1, %c0_2] : memref<8x128xbf16, #tpu.memory_space<vmem>>, vector<8x128xbf16>
    %cst = arith.constant dense<0.000000e+00> : vector<128x128xf32>
    %2 = tpu.matmul %0, %1, %cst {dimension_numbers = #tpu.dot_dimension_numbers<[1], [0], [0], [1], [0, 0, 1, 1], [], []>} : vector<128x8xbf16>, vector<8x128xbf16>, vector<128x128xf32> -> vector<128x128xf32>
    %3 = arith.truncf %2 : vector<128x128xf32> to vector<128x128xbf16>
    %c0_3 = arith.constant 0 : index
    %c0_4 = arith.constant 0 : index
    %4 = vector.load %arg3[%c0_3, %c0_4] : memref<128x128xbf16, #tpu.memory_space<vmem>>, vector<128x128xbf16>
    tpu.vector_store %arg3[%c0_3, %c0_4], %3 {strides = array<i32>} : memref<128x128xbf16, #tpu.memory_space<vmem>>, vector<128x128xbf16>,
    return
  }
  func.func @transform_0(%arg0: i32) -> (i32, i32) {
    %c0_i32 = arith.constant 0 : i32
    %c0_i32_0 = arith.constant 0 : i32
    return %arg0, %c0_i32 : i32, i32
  }
  func.func @transform_1(%arg0: i32) -> (i32, i32) {
    %c0_i32 = arith.constant 0 : i32
    %c0_i32_0 = arith.constant 0 : i32
    %c0_i32_1 = arith.constant 0 : i32
    return %c0_i32, %c0_i32_0 : i32, i32
  }
  func.func @transform_2(%arg0: i32) -> (i32, i32) {
    %c0_i32 = arith.constant 0 : i32
    %c0_i32_0 = arith.constant 0 : i32
    return %arg0, %c0_i32 : i32, i32
  }
}

</mosaic_0001>

<llo_original>
// kernel: tpu_custom_call.1
$region0: #{tpu_custom_call.1}
  #allocation0 [shape = 'u32[]', space=smem, size = 0x4, offset = 0x4, fixed_abs, tag = 'smem constant byte address 0x4 - core index']
  #allocation1 [shape = 'u32[144,128]{1,0:T(1,128)}', space=vmem, size = 0x12000, scoped, tag = 'internal scratch']
  %s0 = inlined_call_operand.vmem [shape: bf16[128,8], index: 0, kind: input, shape index: {}]
  %s1 = inlined_call_operand.vmem [shape: bf16[8,128], index: 1, kind: input, shape index: {}]
  %s2 = inlined_call_operand.hbm [shape: bf16[128,128], index: 2, kind: output, shape index: {}]
  %s3 = sld [smem:[#allocation0]]
  $region18: #{tpu_custom_call.1} parent=0
    _
  %s5 = ssub.s32 1, %s3
  %s6 = scalar_select 0, %s5, %s3
  $region1: #{tpu_custom_call.1} parent=0
    #allocation2 [shape = 'u8[32768]{0}', space=vmem, size = 0x8000, scoped, tag = 'output window, operand 0, single buffered']
    #allocation3 [shape = 's32[1]{0}', space=sflag, size = 0x4, scoped, tag = 'scoped memory for tpu_custom_call.1']
    %7 = vsyncpa [#allocation3], 0
    // Predicated region
    $region2: #{tpu_custom_call.1} parent=1 // pred_check
      _
    $region3: #{tpu_custom_call.1} parent=1 // pred_check_branch
      %9 = sbr.rel (0) target = $region5
    $region4: #{tpu_custom_call.1} parent=1 // pred_region
      _
    $region5: #{tpu_custom_call.1} parent=1 // pred_fallthru
      _
    // Predicated region
    $region6: #{tpu_custom_call.1} parent=1 // pred_check
      _
    $region7: #{tpu_custom_call.1} parent=1 // pred_check_branch
      %11 = sbr.rel (0) target = $region9
    $region8: #{tpu_custom_call.1} parent=1 // pred_region
      _
    $region9: #{tpu_custom_call.1} parent=1 // pred_fallthru
      _
    %v13 = vld [vmem:[%s0] sm:$0xf]
    %v14 = vld [vmem:[%s0 + $0x4] sm:$0xf]
    %v15 = vld [vmem:[%s0 + $0x8] sm:$0xf]
    %v16 = vld [vmem:[%s0 + $0xc] sm:$0xf]
    %v17 = vld [vmem:[%s0 + $0x10] sm:$0xf]
    %v18 = vld [vmem:[%s0 + $0x14] sm:$0xf]
    %v19 = vld [vmem:[%s0 + $0x18] sm:$0xf]
    %v20 = vld [vmem:[%s0 + $0x1c] sm:$0xf]
    %v21 = vld [vmem:[%s0 + $0x20] sm:$0xf]
    %v22 = vld [vmem:[%s0 + $0x24] sm:$0xf]
    %v23 = vld [vmem:[%s0 + $0x28] sm:$0xf]
    %v24 = vld [vmem:[%s0 + $0x2c] sm:$0xf]
    %v25 = vld [vmem:[%s0 + $0x30] sm:$0xf]
    %v26 = vld [vmem:[%s0 + $0x34] sm:$0xf]
    %v27 = vld [vmem:[%s0 + $0x38] sm:$0xf]
    %v28 = vld [vmem:[%s0 + $0x3c] sm:$0xf]
    %v29 = vld [vmem:[%s1] sm:$0xf]
    %v46 = vunpack.c.l.b16 %v13
    %v47 = vunpack.c.l.b16 %v14
    %v48 = vunpack.c.l.b16 %v15
    %v49 = vunpack.c.l.b16 %v16
    %v50 = vunpack.c.l.b16 %v17
    %v51 = vunpack.c.l.b16 %v18
    %v52 = vunpack.c.l.b16 %v19
    %v53 = vunpack.c.l.b16 %v20
    %v54 = vunpack.c.l.b16 %v21
    %v55 = vunpack.c.l.b16 %v22
    %v56 = vunpack.c.l.b16 %v23
    %v57 = vunpack.c.l.b16 %v24
    %v58 = vunpack.c.l.b16 %v25
    %v59 = vunpack.c.l.b16 %v26
    %v60 = vunpack.c.l.b16 %v27
    %v61 = vunpack.c.l.b16 %v28
    %v62 = vpack.c.b16 %v47, %v46
    %v63 = vpack.c.b16 %v49, %v48
    %v64 = vpack.c.b16 %v51, %v50
    %v65 = vpack.c.b16 %v53, %v52
    %v66 = vpack.c.b16 %v55, %v54
    %v67 = vpack.c.b16 %v57, %v56
    %v68 = vpack.c.b16 %v59, %v58
    %v69 = vpack.c.b16 %v61, %v60
    %vm70 = vcmask 64512
    %v72 = vsel %vm70, %v62, 0
    %v75 = vsel %vm70, %v63, 0
    %v78 = vsel %vm70, %v64, 0
    %v81 = vsel %vm70, %v65, 0
    %v84 = vsel %vm70, %v66, 0
    %v87 = vsel %vm70, %v67, 0
    %v90 = vsel %vm70, %v68, 0
    %v93 = vsel %vm70, %v69, 0
    %vm95 = vcmask 1043456
    %v97 = vsel %vm95, %v29, 0
    %99 = vmatprep.subr.bf16.mxu0 0
    %100 = vmatpush1.bf16.msra.mxu0 %v97
    %101 = vmatprep.subr.bf16.mxu0 0
    %102 = vmatpush1.bf16.msra.mxu0 0
    %103 = vmatprep.subr.bf16.mxu0 0
    %104 = vmatpush1.bf16.msra.mxu0 0
    %105 = vmatprep.subr.bf16.mxu0 0
    %106 = vmatpush1.bf16.msra.mxu0 0
    %107 = vmatprep.subr.bf16.mxu0 0
    %108 = vmatpush1.bf16.msra.mxu0 0
    %109 = vmatprep.subr.bf16.mxu0 0
    %110 = vmatpush1.bf16.msra.mxu0 0
    %111 = vmatprep.subr.bf16.mxu0 0
    %112 = vmatpush1.bf16.msra.mxu0 0
    %113 = vmatprep.subr.bf16.mxu0 0
    %114 = vmatpush1.bf16.msra.mxu0 0
    %115 = vmatprep.subr.bf16.mxu0 0
    %116 = vmatpush1.bf16.msra.mxu0 0
    %117 = vmatprep.subr.bf16.mxu0 0
    %118 = vmatpush1.bf16.msra.mxu0 0
    %119 = vmatprep.subr.bf16.mxu0 0
    %120 = vmatpush1.bf16.msra.mxu0 0
    %121 = vmatprep.subr.bf16.mxu0 0
    %122 = vmatpush1.bf16.msra.mxu0 0
    %123 = vmatprep.subr.bf16.mxu0 0
    %124 = vmatpush1.bf16.msra.mxu0 0
    %125 = vmatprep.subr.bf16.mxu0 0
    %126 = vmatpush1.bf16.msra.mxu0 0
    %127 = vmatprep.subr.bf16.mxu0 0
    %128 = vmatpush1.bf16.msra.mxu0 0
    %129 = vmatprep.subr.bf16.mxu0 0
    %130 = vmatpush1.bf16.msra.mxu0 0
    %131 = vmatprep.mubr.bf16.mxu0 0
    %132 = vmatmul.mubr.bf16.gmra.mrb[0].mxu0 %v72
    %v133 = vpop.f32.mrb[0].mxu0
    %v134 = vadd.f32 0.0, %v133
    %v135 = vpop.f32.mrb[0].mxu0
    %v136 = vpop.f32.mrb[0].mxu0
    %v137 = vadd.f32 0.0, %v136
    %v138 = vpop.f32.mrb[0].mxu0
    %139 = vmatprep.mubr.bf16.mxu0 0
    %140 = vmatmul.mubr.bf16.gmra.mrb[0].mxu0 %v75
    %v141 = vpop.f32.mrb[0].mxu0
    %v142 = vadd.f32 0.0, %v141
    %v143 = vpop.f32.mrb[0].mxu0
    %v144 = vpop.f32.mrb[0].mxu0
    %v145 = vadd.f32 0.0, %v144
    %v146 = vpop.f32.mrb[0].mxu0
    %147 = vmatprep.mubr.bf16.mxu0 0
    %148 = vmatmul.mubr.bf16.gmra.mrb[0].mxu0 %v78
    %v149 = vpop.f32.mrb[0].mxu0
    %v150 = vadd.f32 0.0, %v149
    %v151 = vpop.f32.mrb[0].mxu0
    %v152 = vpop.f32.mrb[0].mxu0
    %v153 = vadd.f32 0.0, %v152
    %v154 = vpop.f32.mrb[0].mxu0
    %155 = vmatprep.mubr.bf16.mxu0 0
    %156 = vmatmul.mubr.bf16.gmra.mrb[0].mxu0 %v81
    %v157 = vpop.f32.mrb[0].mxu0
    %v158 = vadd.f32 0.0, %v157
    %v159 = vpop.f32.mrb[0].mxu0
    %v160 = vpop.f32.mrb[0].mxu0
    %v161 = vadd.f32 0.0, %v160
    %v162 = vpop.f32.mrb[0].mxu0
    %163 = vmatprep.mubr.bf16.mxu0 0
    %164 = vmatmul.mubr.bf16.gmra.mrb[0].mxu0 %v84
    %v165 = vpop.f32.mrb[0].mxu0
    %v166 = vadd.f32 0.0, %v165
    %v167 = vpop.f32.mrb[0].mxu0
    %v168 = vpop.f32.mrb[0].mxu0
    %v169 = vadd.f32 0.0, %v168
    %v170 = vpop.f32.mrb[0].mxu0
    %171 = vmatprep.mubr.bf16.mxu0 0
    %172 = vmatmul.mubr.bf16.gmra.mrb[0].mxu0 %v87
    %v173 = vpop.f32.mrb[0].mxu0
    %v174 = vadd.f32 0.0, %v173
    %v175 = vpop.f32.mrb[0].mxu0
    %v176 = vpop.f32.mrb[0].mxu0
    %v177 = vadd.f32 0.0, %v176
    %v178 = vpop.f32.mrb[0].mxu0
    %179 = vmatprep.mubr.bf16.mxu0 0
    %180 = vmatmul.mubr.bf16.gmra.mrb[0].mxu0 %v90
    %v181 = vpop.f32.mrb[0].mxu0
    %v182 = vadd.f32 0.0, %v181
    %v183 = vpop.f32.mrb[0].mxu0
    %v184 = vpop.f32.mrb[0].mxu0
    %v185 = vadd.f32 0.0, %v184
    %v186 = vpop.f32.mrb[0].mxu0
    %187 = vmatprep.mubr.bf16.mxu0 0
    %188 = vmatmul.mubr.bf16.gmra.mrb[0].mxu0 %v93
    %v189 = vpop.f32.mrb[0].mxu0
    %v190 = vadd.f32 0.0, %v189
    %v191 = vpop.f32.mrb[0].mxu0
    %v192 = vpop.f32.mrb[0].mxu0
    %v193 = vadd.f32 0.0, %v192
    %v194 = vpop.f32.mrb[0].mxu0
    %195 = vdwg.mxu0
    %v196 = vpack.c.bf16 %v137, %v134
    %v197 = vpack.c.bf16 %v145, %v142
    %v198 = vpack.c.bf16 %v153, %v150
    %v199 = vpack.c.bf16 %v161, %v158
    %v200 = vpack.c.bf16 %v169, %v166
    %v201 = vpack.c.bf16 %v177, %v174
    %v202 = vpack.c.bf16 %v185, %v182
    %v203 = vpack.c.bf16 %v193, %v190
    %v212 = vunpack.c.l.b16 %v196
    %v213 = vunpack.c.h.b16 %v196
    %v214 = vunpack.c.l.b16 %v197
    %v215 = vunpack.c.h.b16 %v197
    %v216 = vunpack.c.l.b16 %v198
    %v217 = vunpack.c.h.b16 %v198
    %v218 = vunpack.c.l.b16 %v199
    %v219 = vunpack.c.h.b16 %v199
    %v220 = vunpack.c.l.b16 %v200
    %v221 = vunpack.c.h.b16 %v200
    %v222 = vunpack.c.l.b16 %v201
    %v223 = vunpack.c.h.b16 %v201
    %v224 = vunpack.c.l.b16 %v202
    %v225 = vunpack.c.h.b16 %v202
    %v226 = vunpack.c.l.b16 %v203
    %v227 = vunpack.c.h.b16 %v203
    %v228 = vpack.c.b16 %v212, %v212
    %v229 = vpack.c.b16 %v213, %v213
    %v230 = vpack.c.b16 %v214, %v214
    %v231 = vpack.c.b16 %v215, %v215
    %v232 = vpack.c.b16 %v216, %v216
    %v233 = vpack.c.b16 %v217, %v217
    %v234 = vpack.c.b16 %v218, %v218
    %v235 = vpack.c.b16 %v219, %v219
    %v236 = vpack.c.b16 %v220, %v220
    %v237 = vpack.c.b16 %v221, %v221
    %v238 = vpack.c.b16 %v222, %v222
    %v239 = vpack.c.b16 %v223, %v223
    %v240 = vpack.c.b16 %v224, %v224
    %v241 = vpack.c.b16 %v225, %v225
    %v242 = vpack.c.b16 %v226, %v226
    %v243 = vpack.c.b16 %v227, %v227
    %260 = vst [vmem:[#allocation2] sm:$0xf] %v228
    %261 = vst [vmem:[#allocation2 + $0x4] sm:$0xf] %v229
    %262 = vst [vmem:[#allocation2 + $0x8] sm:$0xf] %v230
    %263 = vst [vmem:[#allocation2 + $0xc] sm:$0xf] %v231
    %264 = vst [vmem:[#allocation2 + $0x10] sm:$0xf] %v232
    %265 = vst [vmem:[#allocation2 + $0x14] sm:$0xf] %v233
    %266 = vst [vmem:[#allocation2 + $0x18] sm:$0xf] %v234
    %267 = vst [vmem:[#allocation2 + $0x1c] sm:$0xf] %v235
    %268 = vst [vmem:[#allocation2 + $0x20] sm:$0xf] %v236
    %269 = vst [vmem:[#allocation2 + $0x24] sm:$0xf] %v237
    %270 = vst [vmem:[#allocation2 + $0x28] sm:$0xf] %v238
    %271 = vst [vmem:[#allocation2 + $0x2c] sm:$0xf] %v239
    %272 = vst [vmem:[#allocation2 + $0x30] sm:$0xf] %v240
    %273 = vst [vmem:[#allocation2 + $0x34] sm:$0xf] %v241
    %274 = vst [vmem:[#allocation2 + $0x38] sm:$0xf] %v242
    %275 = vst [vmem:[#allocation2 + $0x3c] sm:$0xf] %v243
    // Predicated region
    $region10: #{tpu_custom_call.1} parent=1 // pred_check
      _
    $region11: #{tpu_custom_call.1} parent=1 // pred_check_branch
      %277 = sbr.rel (0) target = $region13
    $region12: #{tpu_custom_call.1} parent=1 // pred_region
      %s279 = ssub.s32 1024, 1024
      %280 = vsyncadd [#allocation3], %s279
      %s281 = sshll.u32 [#allocation2], 4
      %s282 = int_to_ptr.vmem [resolvable:$true] %s281
      %287 = dma.vmem_to_hbm [thread:$0]  %s282, 1024, %s2, [#allocation3], 64, 64, 4
    $region13: #{tpu_custom_call.1} parent=1 // pred_fallthru
      _
    // Predicated region
    $region14: #{tpu_custom_call.1} parent=1 // pred_check
      _
    $region15: #{tpu_custom_call.1} parent=1 // pred_check_branch
      %289 = sbr.rel (0) target = $region17
    $region16: #{tpu_custom_call.1} parent=1 // pred_region
      %290 = dma.done [#allocation3], 1024
    $region17: #{tpu_custom_call.1} parent=1 // pred_fallthru
      _
    %291 = vsyncpa [#allocation3], 1

</llo_original>
